<compile_context>
chip_gen: v7x
topology: tpu7x:2x2x1
jax: 0.10.0
libtpu: 0.0.40
codegen_flags: <defaults>
</compile_context>

<pallas_src>
import functools
import math

import jax
import jax.numpy as jnp
from jax.experimental import pallas as pl
from jax.experimental.pallas import tpu as pltpu


def _round_up(x, m):
    return ((x + m - 1) // m) * m


# -----------------------------------------------------------------------------
# Pallas kernel: one batch tile of the 3-layer MLP + bounded sigmoid.
# -----------------------------------------------------------------------------
def _pareto_mlp_kernel(pref_ref, w1_ref, b1_ref, w2_ref, b2_ref, w3_ref, b3_ref,
                       o_ref, *, bound):
    x = pref_ref[...].astype(jnp.float32)            # (TB, n_obj)
    w1 = w1_ref[...]                                 # (n_obj, H) f32
    n_obj = w1_ref.shape[0]

    # fc1 on the VPU: K = n_obj is tiny, an MXU pass would pad K to 128/256 and
    # cost as much as fc2.  Unrolled broadcast multiply-adds keep it on VALU.
    h = b1_ref[...]                                  # (1, H) f32, broadcasts
    for k in range(n_obj):
        h = h + x[:, k:k + 1] * w1[k:k + 1, :]
    h = jnp.maximum(h, 0.0)

    # fc2 + relu (MXU, bf16 operands, f32 accumulation / bias / relu)
    h = jnp.dot(h.astype(w2_ref.dtype), w2_ref[...],
                preferred_element_type=jnp.float32) + b2_ref[...]
    h = jnp.maximum(h, 0.0)

    # fc3 (MXU)
    h = jnp.dot(h.astype(w3_ref.dtype), w3_ref[...],
                preferred_element_type=jnp.float32) + b3_ref[...]

    # Output nonlinearity (`bound` is static).
    if bound == 0:
        out = jax.nn.sigmoid(h)
    else:
        # -bound + sigmoid(h) * 2 * bound  ==  bound * tanh(h / 2)
        out = bound * jnp.tanh(0.5 * h)
    o_ref[...] = out.astype(o_ref.dtype)


# -----------------------------------------------------------------------------
# One-time parameter prep: fc2/fc3 weights -> bf16, fc1 weight + biases -> f32.
# -----------------------------------------------------------------------------
def prepare_params(params, use_bf16=True):
    w1, b1, w2, b2, w3, b3 = params
    w_dtype = jnp.bfloat16 if use_bf16 else jnp.float32
    return (w1.astype(jnp.float32),                        # fc1 runs on the VPU
            b1.astype(jnp.float32).reshape(1, -1),
            w2.astype(w_dtype),
            b2.astype(jnp.float32).reshape(1, -1),
            w3.astype(w_dtype),
            b3.astype(jnp.float32).reshape(1, -1))


# -----------------------------------------------------------------------------
# Wrapper: batch tiling, weight pinning, cdiv grid (no full-batch padding).
# -----------------------------------------------------------------------------
@functools.partial(jax.jit, static_argnames=("bound", "block_batch"))
def pareto_set_model_forward(pref, params, bound, block_batch=1024):
    """ParetoSetModel forward. Returns float32 of shape (batch, n_dim)."""
    w1, b1, w2, b2, w3, b3 = params
    batch, n_obj = pref.shape
    hidden = w2.shape[0]
    n_dim = w3.shape[1]

    pref = pref.astype(jnp.float32)

    # Batch tile: multiple of 8 (sublane), capped at block_batch.  If the whole
    # batch fits in one tile but can be split, halve it so the "parallel" grid
    # axis gives both v7x TensorCores work (no effect on 1-TC v5e/v6e).
    batch8 = _round_up(max(batch, 8), 8)
    tb = min(_round_up(block_batch, 8), batch8)
    if batch8 >= 16 and pl.cdiv(batch8, tb) < 2:
        tb = _round_up((batch8 + 1) // 2, 8)
    num_tiles = pl.cdiv(batch, tb)

    def pinned(shape):
        # Full-array block, same block index every grid step -> stays resident.
        return pl.BlockSpec(shape, lambda i: (0, 0))

    weight_bytes = (w1.size * 4 + b1.size * 4
                    + w2.size * w2.dtype.itemsize + b2.size * 4
                    + w3.size * w3.dtype.itemsize + b3.size * 4)
    flops = 2 * batch * (n_obj * hidden + hidden * hidden + hidden * n_dim)
    bytes_accessed = batch * n_obj * 4 + weight_bytes + batch * n_dim * 4

    # Rough per-step VMEM footprint: double-buffered pref/out tiles, pinned
    # (still double-buffered) weights, f32 intermediates + bf16 cast copies.
    vmem_est = (2 * tb * (n_obj + n_dim) * 4
                + 2 * weight_bytes
                + 6 * tb * hidden * 4)
    compiler_kwargs = dict(dimension_semantics=("parallel",))
    if vmem_est > (12 << 20):
        # v5e scoped default is 16 MiB; v7x physical is 64 MiB -> cap at 48 MiB.
        compiler_kwargs["vmem_limit_bytes"] = int(
            min(max(2 * vmem_est, 32 << 20), 48 << 20))

    out = pl.pallas_call(
        functools.partial(_pareto_mlp_kernel, bound=float(bound)),
        out_shape=jax.ShapeDtypeStruct((batch, n_dim), jnp.float32),
        grid=(num_tiles,),
        in_specs=[
            pl.BlockSpec((tb, n_obj), lambda i: (i, 0)),   # pref: tiled on batch
            pinned((n_obj, hidden)),                       # w1 (f32, VPU)
            pinned((1, hidden)),                           # b1
            pinned((hidden, hidden)),                      # w2 (bf16, MXU)
            pinned((1, hidden)),                           # b2
            pinned((hidden, n_dim)),                       # w3 (bf16, MXU)
            pinned((1, n_dim)),                            # b3
        ],
        out_specs=pl.BlockSpec((tb, n_dim), lambda i: (i, 0)),
        compiler_params=pltpu.CompilerParams(**compiler_kwargs),
        cost_estimate=pl.CostEstimate(
            flops=int(flops),
            transcendentals=int(batch * n_dim),
            bytes_accessed=int(bytes_accessed)),
    )(pref, w1, b1, w2, b2, w3, b3)

    # TODO(synk): PyTorch's trailing .to(torch.float64) is not performed — TPU has no native f64; cast on host if the caller truly needs float64.
    return out


# -----------------------------------------------------------------------------
# Pure-JAX reference (f32) for correctness checking.
# -----------------------------------------------------------------------------
def pareto_set_model_reference(pref, params, bound):
    w1, b1, w2, b2, w3, b3 = params
    h = jnp.maximum(pref @ w1 + b1, 0.0)
    h = jnp.maximum(h @ w2 + b2, 0.0)
    h = h @ w3 + b3
    s = jax.nn.sigmoid(h)
    return s if bound == 0 else -bound + s * 2.0 * bound


# -----------------------------------------------------------------------------
# Deterministic parameter init (mirrors nn.Linear defaults + xavier_uniform).
# -----------------------------------------------------------------------------
def init_params(key, n_obj, n_dim, hidden=256):
    def xavier_uniform(k, fan_in, fan_out):
        limit = math.sqrt(6.0 / (fan_in + fan_out))
        # Stored as (in, out) == transpose of PyTorch's (out, in) weight.
        return jax.random.uniform(k, (fan_in, fan_out), jnp.float32, -limit, limit)

    def bias_init(k, fan_in, fan_out):
        # PyTorch Linear default bias init: U(-1/sqrt(fan_in), 1/sqrt(fan_in)).
        limit = 1.0 / math.sqrt(fan_in)
        return jax.random.uniform(k, (1, fan_out), jnp.float32, -limit, limit)

    keys = jax.random.split(key, 6)
    w1 = xavier_uniform(keys[0], n_obj, hidden)
    b1 = bias_init(keys[1], n_obj, hidden)
    w2 = xavier_uniform(keys[2], hidden, hidden)
    b2 = bias_init(keys[3], hidden, hidden)
    w3 = xavier_uniform(keys[4], hidden, n_dim)
    b3 = bias_init(keys[5], hidden, n_dim)
    return (w1, b1, w2, b2, w3, b3)


if __name__ == "__main__":
    n_obj = 3     # preference dimension (input features)
    n_dim = 5     # decision-variable dimension (output features)
    batch = 20    # deliberately not a tile multiple: exercises partial tile
    bound = 2.0   # nonzero bound branch

    key = jax.random.PRNGKey(0)
    pkey, xkey = jax.random.split(key)
    params = init_params(pkey, n_obj, n_dim)
    prepped = prepare_params(params, use_bf16=True)   # one-time bf16 cast

    # Preferences: positive, simplex-normalized.
    pref = jax.random.uniform(xkey, (batch, n_obj), jnp.float32)
    pref = pref / jnp.sum(pref, axis=-1, keepdims=True)

    # block_batch=16 -> 2-tile grid at this toy size (default 1024 for real use).
    out = pareto_set_model_forward(pref, prepped, bound=bound, block_batch=16)
    out = jax.block_until_ready(out)
    ref = pareto_set_model_reference(pref, params, bound)

    assert out.shape == (batch, n_dim)
    assert out.dtype == jnp.float32
    # tanh-form output satisfies |out| <= bound exactly.
    assert bool(jnp.all(jnp.abs(out) <= bound))
    # bf16-operand matmuls with f32 accumulation: compare with tolerance.
    assert bool(jnp.max(jnp.abs(out - ref)) < 5e-2)

    # bound == 0 branch (plain sigmoid).
    out0 = jax.block_until_ready(
        pareto_set_model_forward(pref, prepped, bound=0, block_batch=16))
    ref0 = pareto_set_model_reference(pref, params, 0)
    assert bool(jnp.max(jnp.abs(out0 - ref0)) < 5e-2)

    print("KERNEL_OK")
</pallas_src>

<mosaic_0001>
module attributes {stable_mosaic.version = 11 : i64} {
  func.func @_pareto_mlp_kernel(%arg0: i32, %arg1: memref<16x3xf32, #tpu.memory_space<vmem>>, %arg2: memref<3x256xf32, #tpu.memory_space<vmem>>, %arg3: memref<1x256xf32, #tpu.memory_space<vmem>>, %arg4: memref<256x256xbf16, #tpu.memory_space<vmem>>, %arg5: memref<1x256xf32, #tpu.memory_space<vmem>>, %arg6: memref<256x5xbf16, #tpu.memory_space<vmem>>, %arg7: memref<1x5xf32, #tpu.memory_space<vmem>>, %arg8: memref<16x5xf32, #tpu.memory_space<vmem>>) attributes {dimension_semantics = [#tpu.dimension_semantics<parallel>], iteration_bounds = array<i64: 2>, scalar_prefetch = 0 : i64, scratch_operands = 0 : i64, tpu.core_type = #tpu.core_type<tc>, window_params = [{transform_indices = @transform_0, window_bounds = array<i64: 16, 3>}, {pipeline_mode = #tpu.pipeline_mode<synchronous>, transform_indices = @transform_1, window_bounds = array<i64: 3, 256>}, {pipeline_mode = #tpu.pipeline_mode<synchronous>, transform_indices = @transform_2, window_bounds = array<i64: 1, 256>}, {pipeline_mode = #tpu.pipeline_mode<synchronous>, transform_indices = @transform_3, window_bounds = array<i64: 256, 256>}, {pipeline_mode = #tpu.pipeline_mode<synchronous>, transform_indices = @transform_4, window_bounds = array<i64: 1, 256>}, {pipeline_mode = #tpu.pipeline_mode<synchronous>, transform_indices = @transform_5, window_bounds = array<i64: 256, 5>}, {pipeline_mode = #tpu.pipeline_mode<synchronous>, transform_indices = @transform_6, window_bounds = array<i64: 1, 5>}, {transform_indices = @transform_7, window_bounds = array<i64: 16, 5>}]} {
    %c0 = arith.constant 0 : index
    %c0_0 = arith.constant 0 : index
    %0 = vector.load %arg1[%c0, %c0_0] : memref<16x3xf32, #tpu.memory_space<vmem>>, vector<16x3xf32>
    %c0_1 = arith.constant 0 : index
    %c0_2 = arith.constant 0 : index
    %1 = vector.load %arg2[%c0_1, %c0_2] : memref<3x256xf32, #tpu.memory_space<vmem>>, vector<3x256xf32>
    %c0_3 = arith.constant 0 : index
    %c0_4 = arith.constant 0 : index
    %2 = vector.load %arg3[%c0_3, %c0_4] : memref<1x256xf32, #tpu.memory_space<vmem>>, vector<1x256xf32>
    %3 = vector.extract_strided_slice %0 {offsets = [0, 0], sizes = [16, 1], strides = [1, 1]} : vector<16x3xf32> to vector<16x1xf32>
    %4 = vector.extract_strided_slice %1 {offsets = [0, 0], sizes = [1, 256], strides = [1, 1]} : vector<3x256xf32> to vector<1x256xf32>
    %5 = vector.broadcast %3 : vector<16x1xf32> to vector<16x256xf32>
    %6 = vector.broadcast %4 : vector<1x256xf32> to vector<16x256xf32>
    %7 = arith.mulf %5, %6 : vector<16x256xf32>
    %8 = vector.broadcast %2 : vector<1x256xf32> to vector<16x256xf32>
    %9 = arith.addf %8, %7 : vector<16x256xf32>
    %10 = vector.extract_strided_slice %0 {offsets = [0, 1], sizes = [16, 1], strides = [1, 1]} : vector<16x3xf32> to vector<16x1xf32>
    %11 = vector.extract_strided_slice %1 {offsets = [1, 0], sizes = [1, 256], strides = [1, 1]} : vector<3x256xf32> to vector<1x256xf32>
    %12 = vector.broadcast %10 : vector<16x1xf32> to vector<16x256xf32>
    %13 = vector.broadcast %11 : vector<1x256xf32> to vector<16x256xf32>
    %14 = arith.mulf %12, %13 : vector<16x256xf32>
    %15 = arith.addf %9, %14 : vector<16x256xf32>
    %16 = vector.extract_strided_slice %0 {offsets = [0, 2], sizes = [16, 1], strides = [1, 1]} : vector<16x3xf32> to vector<16x1xf32>
    %17 = vector.extract_strided_slice %1 {offsets = [2, 0], sizes = [1, 256], strides = [1, 1]} : vector<3x256xf32> to vector<1x256xf32>
    %18 = vector.broadcast %16 : vector<16x1xf32> to vector<16x256xf32>
    %19 = vector.broadcast %17 : vector<1x256xf32> to vector<16x256xf32>
    %20 = arith.mulf %18, %19 : vector<16x256xf32>
    %21 = arith.addf %15, %20 : vector<16x256xf32>
    %cst = arith.constant 0.000000e+00 : f32
    %22 = vector.broadcast %cst : f32 to vector<16x256xf32>
    %23 = arith.maximumf %21, %22 : vector<16x256xf32>
    %24 = arith.truncf %23 : vector<16x256xf32> to vector<16x256xbf16>
    %c0_5 = arith.constant 0 : index
    %c0_6 = arith.constant 0 : index
    %25 = vector.load %arg4[%c0_5, %c0_6] : memref<256x256xbf16, #tpu.memory_space<vmem>>, vector<256x256xbf16>
    %cst_7 = arith.constant dense<0.000000e+00> : vector<16x256xf32>
    %26 = tpu.matmul %24, %25, %cst_7 {dimension_numbers = #tpu.dot_dimension_numbers<[1], [0], [0], [1], [0, 0, 1, 1], [], []>} : vector<16x256xbf16>, vector<256x256xbf16>, vector<16x256xf32> -> vector<16x256xf32>
    %c0_8 = arith.constant 0 : index
    %c0_9 = arith.constant 0 : index
    %27 = vector.load %arg5[%c0_8, %c0_9] : memref<1x256xf32, #tpu.memory_space<vmem>>, vector<1x256xf32>
    %28 = vector.broadcast %27 : vector<1x256xf32> to vector<16x256xf32>
    %29 = arith.addf %26, %28 : vector<16x256xf32>
    %cst_10 = arith.constant 0.000000e+00 : f32
    %30 = vector.broadcast %cst_10 : f32 to vector<16x256xf32>
    %31 = arith.maximumf %29, %30 : vector<16x256xf32>
    %32 = arith.truncf %31 : vector<16x256xf32> to vector<16x256xbf16>
    %c0_11 = arith.constant 0 : index
    %c0_12 = arith.constant 0 : index
    %33 = vector.load %arg6[%c0_11, %c0_12] : memref<256x5xbf16, #tpu.memory_space<vmem>>, vector<256x5xbf16>
    %cst_13 = arith.constant dense<0.000000e+00> : vector<16x5xf32>
    %34 = tpu.matmul %32, %33, %cst_13 {dimension_numbers = #tpu.dot_dimension_numbers<[1], [0], [0], [1], [0, 0, 1, 1], [], []>} : vector<16x256xbf16>, vector<256x5xbf16>, vector<16x5xf32> -> vector<16x5xf32>
    %c0_14 = arith.constant 0 : index
    %c0_15 = arith.constant 0 : index
    %35 = vector.load %arg7[%c0_14, %c0_15] : memref<1x5xf32, #tpu.memory_space<vmem>>, vector<1x5xf32>
    %36 = vector.broadcast %35 : vector<1x5xf32> to vector<16x5xf32>
    %37 = arith.addf %34, %36 : vector<16x5xf32>
    %cst_16 = arith.constant 5.000000e-01 : f32
    %38 = vector.broadcast %cst_16 : f32 to vector<16x5xf32>
    %39 = arith.mulf %38, %37 : vector<16x5xf32>
    %40 = math.tanh %39 : vector<16x5xf32>
    %cst_17 = arith.constant 2.000000e+00 : f32
    %41 = vector.broadcast %cst_17 : f32 to vector<16x5xf32>
    %42 = arith.mulf %41, %40 : vector<16x5xf32>
    %c0_18 = arith.constant 0 : index
    %c0_19 = arith.constant 0 : index
    %43 = vector.load %arg8[%c0_18, %c0_19] : memref<16x5xf32, #tpu.memory_space<vmem>>, vector<16x5xf32>
    tpu.vector_store %arg8[%c0_18, %c0_19], %42 {strides = array<i32>} : memref<16x5xf32, #tpu.memory_space<vmem>>, vector<16x5xf32>,
    return
  }
  func.func @transform_0(%arg0: i32) -> (i32, i32) {
    %c0_i32 = arith.constant 0 : i32
    %c0_i32_0 = arith.constant 0 : i32
    return %arg0, %c0_i32 : i32, i32
  }
  func.func @transform_1(%arg0: i32) -> (i32, i32) {
    %c0_i32 = arith.constant 0 : i32
    %c0_i32_0 = arith.constant 0 : i32
    %c0_i32_1 = arith.constant 0 : i32
    return %c0_i32, %c0_i32_0 : i32, i32
  }
  func.func @transform_2(%arg0: i32) -> (i32, i32) {
    %c0_i32 = arith.constant 0 : i32
    %c0_i32_0 = arith.constant 0 : i32
    %c0_i32_1 = arith.constant 0 : i32
    return %c0_i32, %c0_i32_0 : i32, i32
  }
  func.func @transform_3(%arg0: i32) -> (i32, i32) {
    %c0_i32 = arith.constant 0 : i32
    %c0_i32_0 = arith.constant 0 : i32
    %c0_i32_1 = arith.constant 0 : i32
    return %c0_i32, %c0_i32_0 : i32, i32
  }
  func.func @transform_4(%arg0: i32) -> (i32, i32) {
    %c0_i32 = arith.constant 0 : i32
    %c0_i32_0 = arith.constant 0 : i32
    %c0_i32_1 = arith.constant 0 : i32
    return %c0_i32, %c0_i32_0 : i32, i32
  }
  func.func @transform_5(%arg0: i32) -> (i32, i32) {
    %c0_i32 = arith.constant 0 : i32
    %c0_i32_0 = arith.constant 0 : i32
    %c0_i32_1 = arith.constant 0 : i32
    return %c0_i32, %c0_i32_0 : i32, i32
  }
  func.func @transform_6(%arg0: i32) -> (i32, i32) {
    %c0_i32 = arith.constant 0 : i32
    %c0_i32_0 = arith.constant 0 : i32
    %c0_i32_1 = arith.constant 0 : i32
    return %c0_i32, %c0_i32_0 : i32, i32
  }
  func.func @transform_7(%arg0: i32) -> (i32, i32) {
    %c0_i32 = arith.constant 0 : i32
    %c0_i32_0 = arith.constant 0 : i32
    return %arg0, %c0_i32 : i32, i32
  }
}

</mosaic_0001>

<llo_original>
// kernel: pareto_set_model_forward.1
$region0: #{pareto_set_model_forward.1}
  #allocation0 [shape = 'u32[]', space=smem, size = 0x4, offset = 0x4, fixed_abs, tag = 'smem constant byte address 0x4 - core index']
  #allocation1 [shape = 'u32[144,128]{1,0:T(1,128)}', space=vmem, size = 0x12000, scoped, tag = 'internal scratch']
  %s0 = inlined_call_operand.vmem [shape: f32[20,3], index: 0, kind: input, shape index: {}]
  %s1 = inlined_call_operand.vmem [shape: f32[3,256], index: 1, kind: input, shape index: {}]
  %s2 = inlined_call_operand.vmem [shape: f32[1,256], index: 2, kind: input, shape index: {}]
  %s3 = inlined_call_operand.hbm [shape: bf16[256,256], index: 3, kind: input, shape index: {}]
  %s4 = inlined_call_operand.vmem [shape: f32[1,256], index: 4, kind: input, shape index: {}]
  %s5 = inlined_call_operand.vmem [shape: bf16[256,5], index: 5, kind: input, shape index: {}]
  %s6 = inlined_call_operand.vmem [shape: f32[1,5], index: 6, kind: input, shape index: {}]
  %s7 = inlined_call_operand.vmem [shape: f32[20,5], index: 7, kind: output, shape index: {}]
  %s8 = sld [smem:[#allocation0]]
  $region113: #{pareto_set_model_forward.1} parent=0
    _
  %s10 = ssub.s32 1, %s8
  %s11 = scalar_select 0, %s10, %s8
  $region1: #{pareto_set_model_forward.1} parent=0
    #allocation2 [shape = 'u8[131072]{0}', space=vmem, size = 0x20000, scoped, tag = 'input window, operand 3, single buffered']
    #allocation3 [shape = 's32[2]{0}', space=sflag, size = 0x8, scoped, tag = 'scoped memory for pareto_set_model_forward.1']
    #allocation4 [shape = 'u8[16384]{0}', space=vmem, size = 0x4000, scoped, tag = 'output window, operand 0']
    %12 = vsyncpa [#allocation3], 0
    loop: start=0, step=1, limit=4
    $region2: #{pareto_set_model_forward.1} parent=1 // loop_pre_header
      _
    $region3: #{pareto_set_model_forward.1} parent=1 // loop_header
      %s14 = sphi 0, %s18
      %p15 = scmp.ge.s32.totalorder %s14, 4
      %s24 = sphi 0, %s26
      %s27 = sphi 0, %s24
      %s28 = sphi 0, %s27
      %s44 = sphi 0, %s28
      %s48 = sphi 0, %s48
      %s50 = sphi 0, %s48
      %s51 = sphi 0, %s50
      %s65 = sphi 0, %s51
      %s69 = sphi 0, %s69
      %s71 = sphi 0, %s69
      %s72 = sphi 0, %s71
      %s86 = sphi 0, %s72
      %s90 = sphi 0, %s90
      %s92 = sphi 0, %s90
      %s93 = sphi 0, %s92
      %s107 = sphi 0, %s93
      %s111 = sphi 0, %s111
      %s113 = sphi 0, %s111
      %s114 = sphi 0, %s113
      %s128 = sphi 0, %s114
      %s132 = sphi 0, %s132
      %s134 = sphi 0, %s132
      %s135 = sphi 0, %s134
      %s149 = sphi 0, %s135
      %s153 = sphi 0, %s153
      %s155 = sphi 0, %s153
      %s156 = sphi 0, %s155
      %s170 = sphi 0, %s156
      %s176 = sphi 0, %s178
      %s179 = sphi 0, %s176
      %s180 = sphi 0, %s179
      %s196 = sphi 0, %s180
    $region4: #{pareto_set_model_forward.1} parent=1 // loop_header_branch
      %17 = sbr.rel (%p15) target = $region8
    $region5: #{pareto_set_model_forward.1} parent=1 // loop_body
      %s19 = ssub.s32 %s14, 1
      %s20 = ssub.s32 %s14, 2
      %s21 = sadd.s32 %s14, 1
      %s22 = ssub.s32 %s14, %s21
      %p23 = scmp.eq.s32.totalorder %s22, 0
      %s25 = sadd.s32 %s24, 1
      %s26 = scalar_select %p23, %s24, %s25
      %p29 = pneg %p23
      %p30 = scmp.eq.s32.totalorder %s14, 1
      %p31 = por %p29, %p30
      %p32 = scmp.ne.s32.totalorder %s24, %s27
      %p33 = scmp.eq.s32.totalorder %s14, 0
      %p34 = por %p32, %p33
      %p35 = scmp.ne.s32.totalorder %s24, %s27
      %p36 = scmp.eq.s32.totalorder %s19, 1
      %p37 = por %p35, %p36
      %p38 = scmp.ne.s32.totalorder %s27, %s28
      %p39 = scmp.eq.s32.totalorder %s19, 0
      %p40 = por %p38, %p39
      %p41 = scmp.ne.s32.totalorder %s27, %s28
      %p42 = scmp.eq.s32.totalorder %s20, 1
      %p43 = por %p41, %p42
      %p45 = scmp.ne.s32.totalorder %s28, %s44
      %p46 = scmp.eq.s32.totalorder %s20, 0
      %p47 = por %p45, %p46
      %s49 = sadd.s32 %s48, 1
      %p52 = scmp.eq.s32.totalorder %s14, 1
      %p53 = scmp.ne.s32.totalorder %s48, %s50
      %p54 = scmp.eq.s32.totalorder %s14, 0
      %p55 = por %p53, %p54
      %p56 = scmp.ne.s32.totalorder %s48, %s50
      %p57 = scmp.eq.s32.totalorder %s19, 1
      %p58 = por %p56, %p57
      %p59 = scmp.ne.s32.totalorder %s50, %s51
      %p60 = scmp.eq.s32.totalorder %s19, 0
      %p61 = por %p59, %p60
      %p62 = scmp.ne.s32.totalorder %s50, %s51
      %p63 = scmp.eq.s32.totalorder %s20, 1
      %p64 = por %p62, %p63
      %p66 = scmp.ne.s32.totalorder %s51, %s65
      %p67 = scmp.eq.s32.totalorder %s20, 0
      %p68 = por %p66, %p67
      %s70 = sadd.s32 %s69, 1
      %p73 = scmp.eq.s32.totalorder %s14, 1
      %p74 = scmp.ne.s32.totalorder %s69, %s71
      %p75 = scmp.eq.s32.totalorder %s14, 0
      %p76 = por %p74, %p75
      %p77 = scmp.ne.s32.totalorder %s69, %s71
      %p78 = scmp.eq.s32.totalorder %s19, 1
      %p79 = por %p77, %p78
      %p80 = scmp.ne.s32.totalorder %s71, %s72
      %p81 = scmp.eq.s32.totalorder %s19, 0
      %p82 = por %p80, %p81
      %p83 = scmp.ne.s32.totalorder %s71, %s72
      %p84 = scmp.eq.s32.totalorder %s20, 1
      %p85 = por %p83, %p84
      %p87 = scmp.ne.s32.totalorder %s72, %s86
      %p88 = scmp.eq.s32.totalorder %s20, 0
      %p89 = por %p87, %p88
      %s91 = sadd.s32 %s90, 1
      %p94 = scmp.eq.s32.totalorder %s14, 1
      %p95 = scmp.ne.s32.totalorder %s90, %s92
      %p96 = scmp.eq.s32.totalorder %s14, 0
      %p97 = por %p95, %p96
      %p98 = scmp.ne.s32.totalorder %s90, %s92
      %p99 = scmp.eq.s32.totalorder %s19, 1
      %p100 = por %p98, %p99
      %p101 = scmp.ne.s32.totalorder %s92, %s93
      %p102 = scmp.eq.s32.totalorder %s19, 0
      %p103 = por %p101, %p102
      %p104 = scmp.ne.s32.totalorder %s92, %s93
      %p105 = scmp.eq.s32.totalorder %s20, 1
      %p106 = por %p104, %p105
      %p108 = scmp.ne.s32.totalorder %s93, %s107
      %p109 = scmp.eq.s32.totalorder %s20, 0
      %p110 = por %p108, %p109
      %s112 = sadd.s32 %s111, 1
      %p115 = scmp.eq.s32.totalorder %s14, 1
      %p116 = scmp.ne.s32.totalorder %s111, %s113
      %p117 = scmp.eq.s32.totalorder %s14, 0
      %p118 = por %p116, %p117
      %p119 = scmp.ne.s32.totalorder %s111, %s113
      %p120 = scmp.eq.s32.totalorder %s19, 1
      %p121 = por %p119, %p120
      %p122 = scmp.ne.s32.totalorder %s113, %s114
      %p123 = scmp.eq.s32.totalorder %s19, 0
      %p124 = por %p122, %p123
      %p125 = scmp.ne.s32.totalorder %s113, %s114
      %p126 = scmp.eq.s32.totalorder %s20, 1
      %p127 = por %p125, %p126
      %p129 = scmp.ne.s32.totalorder %s114, %s128
      %p130 = scmp.eq.s32.totalorder %s20, 0
      %p131 = por %p129, %p130
      %s133 = sadd.s32 %s132, 1
      %p136 = scmp.eq.s32.totalorder %s14, 1
      %p137 = scmp.ne.s32.totalorder %s132, %s134
      %p138 = scmp.eq.s32.totalorder %s14, 0
      %p139 = por %p137, %p138
      %p140 = scmp.ne.s32.totalorder %s132, %s134
      %p141 = scmp.eq.s32.totalorder %s19, 1
      %p142 = por %p140, %p141
      %p143 = scmp.ne.s32.totalorder %s134, %s135
      %p144 = scmp.eq.s32.totalorder %s19, 0
      %p145 = por %p143, %p144
      %p146 = scmp.ne.s32.totalorder %s134, %s135
      %p147 = scmp.eq.s32.totalorder %s20, 1
      %p148 = por %p146, %p147
      %p150 = scmp.ne.s32.totalorder %s135, %s149
      %p151 = scmp.eq.s32.totalorder %s20, 0
      %p152 = por %p150, %p151
      %s154 = sadd.s32 %s153, 1
      %p157 = scmp.eq.s32.totalorder %s14, 1
      %p158 = scmp.ne.s32.totalorder %s153, %s155
      %p159 = scmp.eq.s32.totalorder %s14, 0
      %p160 = por %p158, %p159
      %p161 = scmp.ne.s32.totalorder %s153, %s155
      %p162 = scmp.eq.s32.totalorder %s19, 1
      %p163 = por %p161, %p162
      %p164 = scmp.ne.s32.totalorder %s155, %s156
      %p165 = scmp.eq.s32.totalorder %s19, 0
      %p166 = por %p164, %p165
      %p167 = scmp.ne.s32.totalorder %s155, %s156
      %p168 = scmp.eq.s32.totalorder %s20, 1
      %p169 = por %p167, %p168
      %p171 = scmp.ne.s32.totalorder %s156, %s170
      %p172 = scmp.eq.s32.totalorder %s20, 0
      %p173 = por %p171, %p172
      %s174 = ssub.s32 %s14, %s21
      %p175 = scmp.eq.s32.totalorder %s174, 0
      %s177 = sadd.s32 %s176, 1
      %s178 = scalar_select %p175, %s176, %s177
      %p181 = pneg %p175
      %p182 = scmp.eq.s32.totalorder %s14, 1
      %p183 = por %p181, %p182
      %p184 = scmp.ne.s32.totalorder %s176, %s179
      %p185 = scmp.eq.s32.totalorder %s14, 0
      %p186 = por %p184, %p185
      %p187 = scmp.ne.s32.totalorder %s176, %s179
      %p188 = scmp.eq.s32.totalorder %s19, 1
      %p189 = por %p187, %p188
      %p190 = scmp.ne.s32.totalorder %s179, %s180
      %p191 = scmp.eq.s32.totalorder %s19, 0
      %p192 = por %p190, %p191
      %p193 = scmp.ne.s32.totalorder %s179, %s180
      %p194 = scmp.eq.s32.totalorder %s20, 1
      %p195 = por %p193, %p194
      %p197 = scmp.ne.s32.totalorder %s180, %s196
      %p198 = scmp.eq.s32.totalorder %s20, 0
      %p199 = por %p197, %p198
      %p200 = scmp.le.s32.totalorder 1, %s14
      %p201 = scmp.lt.s32.totalorder %s14, 3
      %p202 = pnand %p200, %p201
      %p203 = pneg %p202
      // Predicated region
      $region9: #{pareto_set_model_forward.1} parent=5 // pred_check
        _
      $region10: #{pareto_set_model_forward.1} parent=5 // pred_check_branch
        %205 = sbr.rel (%p202) target = $region12
      $region11: #{pareto_set_model_forward.1} parent=5 // pred_region
        %s206 = ssub.s32 %s14, 1
        // Predicated region
        $region13: #{pareto_set_model_forward.1} parent=11 // pred_check
          %p207 = pneg %p61
        $region14: #{pareto_set_model_forward.1} parent=11 // pred_check_branch
          %209 = sbr.rel (%p207) target = $region16
        $region15: #{pareto_set_model_forward.1} parent=11 // pred_region
          _
        $region16: #{pareto_set_model_forward.1} parent=11 // pred_fallthru
          _
        // Predicated region
        $region17: #{pareto_set_model_forward.1} parent=11 // pred_check
          %p210 = pneg %p82
        $region18: #{pareto_set_model_forward.1} parent=11 // pred_check_branch
          %212 = sbr.rel (%p210) target = $region20
        $region19: #{pareto_set_model_forward.1} parent=11 // pred_region
          _
        $region20: #{pareto_set_model_forward.1} parent=11 // pred_fallthru
          _
        // Predicated region
        $region21: #{pareto_set_model_forward.1} parent=11 // pred_check
          %p213 = pneg %p103
        $region22: #{pareto_set_model_forward.1} parent=11 // pred_check_branch
          %215 = sbr.rel (%p213) target = $region24
        $region23: #{pareto_set_model_forward.1} parent=11 // pred_region
          %s217 = ssub.s32 4096, 4096
          %218 = vsyncadd [#allocation3], %s217
          %s219 = sshll.u32 [#allocation2], 4
          %s220 = int_to_ptr.vmem [resolvable:$true] %s219
          %225 = dma.hbm_to_vmem [thread:$0]  %s3, 4096, %s220, [#allocation3], 128, 128, 8
        $region24: #{pareto_set_model_forward.1} parent=11 // pred_fallthru
          _
        // Predicated region
        $region25: #{pareto_set_model_forward.1} parent=11 // pred_check
          %p226 = pneg %p124
        $region26: #{pareto_set_model_forward.1} parent=11 // pred_check_branch
          %228 = sbr.rel (%p226) target = $region28
        $region27: #{pareto_set_model_forward.1} parent=11 // pred_region
          _
        $region28: #{pareto_set_model_forward.1} parent=11 // pred_fallthru
          _
        // Predicated region
        $region29: #{pareto_set_model_forward.1} parent=11 // pred_check
          %p229 = pneg %p145
        $region30: #{pareto_set_model_forward.1} parent=11 // pred_check_branch
          %231 = sbr.rel (%p229) target = $region32
        $region31: #{pareto_set_model_forward.1} parent=11 // pred_region
          _
        $region32: #{pareto_set_model_forward.1} parent=11 // pred_fallthru
          _
        // Predicated region
        $region33: #{pareto_set_model_forward.1} parent=11 // pred_check
          %p232 = pneg %p166
        $region34: #{pareto_set_model_forward.1} parent=11 // pred_check_branch
          %234 = sbr.rel (%p232) target = $region36
        $region35: #{pareto_set_model_forward.1} parent=11 // pred_region
          _
        $region36: #{pareto_set_model_forward.1} parent=11 // pred_fallthru
          _
      $region12: #{pareto_set_model_forward.1} parent=5 // pred_fallthru
        _
      %p235 = scmp.lt.s32.totalorder %s14, 2
      // Predicated region
      $region37: #{pareto_set_model_forward.1} parent=5 // pred_check
        %p236 = pneg %p235
      $region38: #{pareto_set_model_forward.1} parent=5 // pred_check_branch
        %238 = sbr.rel (%p236) target = $region40
      $region39: #{pareto_set_model_forward.1} parent=5 // pred_region
        // Predicated region
        $region41: #{pareto_set_model_forward.1} parent=39 // pred_check
          %p239 = pneg %p34
        $region42: #{pareto_set_model_forward.1} parent=39 // pred_check_branch
          %241 = sbr.rel (%p239) target = $region44
        $region43: #{pareto_set_model_forward.1} parent=39 // pred_region
          %s242 = smul.u32 2, %s14
          %s243 = ssub.s32 3, %s242
          %p244 = scmp.lt.s32.totalorder %s243, 2
          %s245 = scalar_select %p244, %s243, 2
          %s246 = smul.u32 128, %s245
          %p247 = scmp.lt.s32.totalorder %s242, 2
          %s248 = scalar_select %p247, %s242, 2
          %s249 = smul.addr %s248, 8
          %s250 = scalar_lea.vmem %s0, %s249
          %s251 = smul.u32 2, %s14
          %s252 = ssub.s32 3, %s251
          %p253 = scmp.lt.s32.totalorder %s252, 2
          %s254 = scalar_select %p253, %s252, 2
          %s255 = smul.u32 128, %s254
        $region44: #{pareto_set_model_forward.1} parent=39 // pred_fallthru
          _
      $region40: #{pareto_set_model_forward.1} parent=5 // pred_fallthru
        _
      %p256 = scmp.le.s32.totalorder 1, %s14
      %p257 = scmp.lt.s32.totalorder %s14, 3
      %p258 = pnand %p256, %p257
      %p259 = pneg %p258
      // Predicated region
      $region45: #{pareto_set_model_forward.1} parent=5 // pred_check
        _
      $region46: #{pareto_set_model_forward.1} parent=5 // pred_check_branch
        %261 = sbr.rel (%p258) target = $region48
      $region47: #{pareto_set_model_forward.1} parent=5 // pred_region
        %s262 = ssub.s32 %s14, 1
        // Predicated region
        $region49: #{pareto_set_model_forward.1} parent=47 // pred_check
          %p263 = pneg %p103
        $region50: #{pareto_set_model_forward.1} parent=47 // pred_check_branch
          %265 = sbr.rel (%p263) target = $region52
        $region51: #{pareto_set_model_forward.1} parent=47 // pred_region
          %266 = dma.done [#allocation3], 4096
        $region52: #{pareto_set_model_forward.1} parent=47 // pred_fallthru
          _
        %s267 = smul.u32 2, %s19
        %s268 = ssub.s32 3, %s267
        %p269 = scmp.lt.s32.totalorder %s268, 2
        %s270 = scalar_select %p269, %s268, 2
        %s271 = smul.u32 128, %s270
        %p272 = scmp.lt.s32.totalorder %s267, 2
        %s273 = scalar_select %p272, %s267, 2
        %s274 = smul.addr %s273, 8
        %s275 = scalar_lea.vmem %s0, %s274
        %p276 = pneg %p40
        %p277 = pneg %p37
        %p278 = pneg %p61
        %p279 = pneg %p58
        %p280 = pneg %p82
        %p281 = pneg %p79
        %p282 = pneg %p103
        %p283 = pneg %p100
        %p284 = pneg %p124
        %p285 = pneg %p121
        %p286 = pneg %p145
        %p287 = pneg %p142
        %p288 = pneg %p166
        %p289 = pneg %p163
        %p290 = pneg %p192
        %p291 = pneg %p189
        %s292 = sand.u32 %s179, 1
        %s293 = sand.u32 %s179, 1
        %s294 = smul.addr %s293, 16
        %s295 = scalar_lea.vmem [#allocation4], %s294
        %s296 = smul.u32 2, %s19
        %s297 = ssub.s32 3, %s296
        %p298 = scmp.lt.s32.totalorder %s297, 2
        %s299 = scalar_select %p298, %s297, 2
        %s300 = smul.u32 128, %s299
        %p301 = scmp.lt.s32.totalorder %s296, 2
        %s302 = scalar_select %p301, %s296, 2
        %s303 = smul.addr %s302, 8
        %s304 = scalar_lea.vmem %s0, %s303
        %s305 = smul.u32 2, %s19
        %s306 = ssub.s32 3, %s305
        %p307 = scmp.lt.s32.totalorder %s306, 2
        %s308 = scalar_select %p307, %s306, 2
        %s309 = smul.u32 128, %s308
        %s310 = smul.u32 2, %s19
        %s311 = ssub.s32 3, %s310
        %p312 = scmp.lt.s32.totalorder %s311, 2
        %s313 = scalar_select %p312, %s311, 2
        %s314 = smul.u32 128, %s313
        %v316 = vld [vmem:[%s304] sm:$0xff]
        %v317 = vld [vmem:[%s304 + $0x8] sm:$0xff]
        %v318 = vld [vmem:[%s1] sm:$0x77]
        %v319 = vld [vmem:[%s2] sm:$0x3]
        %321 = vset.pattern.permute.xlu0 0
        %322 = vperm.xlu0 %321, %v316
        %v323 = vpop.permute.xlu0 %322
        %326 = vset.pattern.permute.xlu0 0
        %327 = vperm.xlu0 %326, %v317
        %v328 = vpop.permute.xlu0 %327
        %v331 = vlaneseq
        %v332 = vshrl.u32 %v331, 7
        %v333 = vsub.s32 0, %v332
        %v334 = vrot.slane %v318, %v333
        %v335 = vlaneseq
        %v336 = vshrl.u32 %v335, 7
        %v337 = vsub.s32 4, %v336
        %v338 = vrot.slane %v318, %v337
        %v341 = vlaneseq
        %v342 = vshrl.u32 %v341, 7
        %v343 = vsub.s32 0, %v342
        %v344 = vrot.slane %v334, %v343
        %v345 = vlaneseq
        %v346 = vshrl.u32 %v345, 7
        %v347 = vsub.s32 0, %v346
        %v348 = vrot.slane %v338, %v347
        %v349 = vmul.f32 %v323, %v344
        %v350 = vmul.f32 %v323, %v348
        %v351 = vmul.f32 %v328, %v344
        %v352 = vmul.f32 %v328, %v348
        %v354 = vlaneseq
        %v355 = vshrl.u32 %v354, 7
        %v356 = vsub.s32 0, %v355
        %v357 = vrot.slane %v319, %v356
        %v358 = vlaneseq
        %v359 = vshrl.u32 %v358, 7
        %v360 = vsub.s32 1, %v359
        %v361 = vrot.slane %v319, %v360
        %v364 = vadd.f32 %v357, %v349
        %v365 = vadd.f32 %v361, %v350
        %v366 = vadd.f32 %v357, %v351
        %v367 = vadd.f32 %v361, %v352
        %368 = vset.pattern.permute.xlu0 1
        %369 = vperm.xlu0 %368, %v316
        %v370 = vpop.permute.xlu0 %369
        %372 = vset.pattern.permute.xlu0 1
        %373 = vperm.xlu0 %372, %v317
        %v374 = vpop.permute.xlu0 %373
        %v376 = vlaneseq
        %v377 = vshrl.u32 %v376, 7
        %v378 = vsub.s32 1, %v377
        %v379 = vrot.slane %v318, %v378
        %v380 = vlaneseq
        %v381 = vshrl.u32 %v380, 7
        %v382 = vsub.s32 5, %v381
        %v383 = vrot.slane %v318, %v382
        %v386 = vlaneseq
        %v387 = vshrl.u32 %v386, 7
        %v388 = vsub.s32 1, %v387
        %v389 = vrot.slane %v379, %v388
        %v390 = vlaneseq
        %v391 = vshrl.u32 %v390, 7
        %v392 = vsub.s32 1, %v391
        %v393 = vrot.slane %v383, %v392
        %v394 = vmul.f32 %v370, %v389
        %v395 = vmul.f32 %v370, %v393
        %v396 = vmul.f32 %v374, %v389
        %v397 = vmul.f32 %v374, %v393
        %v398 = vadd.f32 %v364, %v394
        %v399 = vadd.f32 %v365, %v395
        %v400 = vadd.f32 %v366, %v396
        %v401 = vadd.f32 %v367, %v397
        %402 = vset.pattern.permute.xlu0 2
        %403 = vperm.xlu0 %402, %v316
        %v404 = vpop.permute.xlu0 %403
        %406 = vset.pattern.permute.xlu0 2
        %407 = vperm.xlu0 %406, %v317
        %v408 = vpop.permute.xlu0 %407
        %v410 = vlaneseq
        %v411 = vshrl.u32 %v410, 7
        %v412 = vsub.s32 2, %v411
        %v413 = vrot.slane %v318, %v412
        %v414 = vlaneseq
        %v415 = vshrl.u32 %v414, 7
        %v416 = vsub.s32 6, %v415
        %v417 = vrot.slane %v318, %v416
        %v420 = vlaneseq
        %v421 = vshrl.u32 %v420, 7
        %v422 = vsub.s32 2, %v421
        %v423 = vrot.slane %v413, %v422
        %v424 = vlaneseq
        %v425 = vshrl.u32 %v424, 7
        %v426 = vsub.s32 2, %v425
        %v427 = vrot.slane %v417, %v426
        %v428 = vmul.f32 %v404, %v423
        %v429 = vmul.f32 %v404, %v427
        %v430 = vmul.f32 %v408, %v423
        %v431 = vmul.f32 %v408, %v427
        %v432 = vadd.f32 %v398, %v428
        %v433 = vadd.f32 %v399, %v429
        %v434 = vadd.f32 %v400, %v430
        %v435 = vadd.f32 %v401, %v431
        %v436 = vmax.f32 %v432, 0.0
        %v437 = vmax.f32 %v433, 0.0
        %v438 = vmax.f32 %v434, 0.0
        %v439 = vmax.f32 %v435, 0.0
        %v440 = vpack.c.bf16 %v438, %v436
        %v441 = vpack.c.bf16 %v439, %v437
        %v442 = vld [vmem:[#allocation2] sm:$0xff]
        %v443 = vld [vmem:[#allocation2 + $0x8] sm:$0xff]
        %v444 = vld [vmem:[#allocation2 + $0x10] sm:$0xff]
        %v445 = vld [vmem:[#allocation2 + $0x18] sm:$0xff]
        %v446 = vld [vmem:[#allocation2 + $0x20] sm:$0xff]
        %v447 = vld [vmem:[#allocation2 + $0x28] sm:$0xff]
        %v448 = vld [vmem:[#allocation2 + $0x30] sm:$0xff]
        %v449 = vld [vmem:[#allocation2 + $0x38] sm:$0xff]
        %v450 = vld [vmem:[#allocation2 + $0x40] sm:$0xff]
        %v451 = vld [vmem:[#allocation2 + $0x48] sm:$0xff]
        %v452 = vld [vmem:[#allocation2 + $0x50] sm:$0xff]
        %v453 = vld [vmem:[#allocation2 + $0x58] sm:$0xff]
        %v454 = vld [vmem:[#allocation2 + $0x60] sm:$0xff]
        %v455 = vld [vmem:[#allocation2 + $0x68] sm:$0xff]
        %v456 = vld [vmem:[#allocation2 + $0x70] sm:$0xff]
        %v457 = vld [vmem:[#allocation2 + $0x78] sm:$0xff]
        %v458 = vld [vmem:[#allocation2 + $0x80] sm:$0xff]
        %v459 = vld [vmem:[#allocation2 + $0x88] sm:$0xff]
        %v460 = vld [vmem:[#allocation2 + $0x90] sm:$0xff]
        %v461 = vld [vmem:[#allocation2 + $0x98] sm:$0xff]
        %v462 = vld [vmem:[#allocation2 + $0xa0] sm:$0xff]
        %v463 = vld [vmem:[#allocation2 + $0xa8] sm:$0xff]
        %v464 = vld [vmem:[#allocation2 + $0xb0] sm:$0xff]
        %v465 = vld [vmem:[#allocation2 + $0xb8] sm:$0xff]
        %v466 = vld [vmem:[#allocation2 + $0xc0] sm:$0xff]
        %v467 = vld [vmem:[#allocation2 + $0xc8] sm:$0xff]
        %v468 = vld [vmem:[#allocation2 + $0xd0] sm:$0xff]
        %v469 = vld [vmem:[#allocation2 + $0xd8] sm:$0xff]
        %v470 = vld [vmem:[#allocation2 + $0xe0] sm:$0xff]
        %v471 = vld [vmem:[#allocation2 + $0xe8] sm:$0xff]
        %v472 = vld [vmem:[#allocation2 + $0xf0] sm:$0xff]
        %v473 = vld [vmem:[#allocation2 + $0xf8] sm:$0xff]
        %v474 = vld [vmem:[%s4] sm:$0x3]
        %v476 = vlaneseq
        %v477 = vshrl.u32 %v476, 7
        %v478 = vsub.s32 0, %v477
        %v479 = vrot.slane %v474, %v478
        %v480 = vlaneseq
        %v481 = vshrl.u32 %v480, 7
        %v482 = vsub.s32 1, %v481
        %v483 = vrot.slane %v474, %v482
        %v518 = vunpack.c.l.b16 %v442
        %v519 = vunpack.c.h.b16 %v442
        %v520 = vunpack.c.l.b16 %v443
        %v521 = vunpack.c.h.b16 %v443
        %v522 = vunpack.c.l.b16 %v444
        %v523 = vunpack.c.h.b16 %v444
        %v524 = vunpack.c.l.b16 %v445
        %v525 = vunpack.c.h.b16 %v445
        %v526 = vunpack.c.l.b16 %v446
        %v527 = vunpack.c.h.b16 %v446
        %v528 = vunpack.c.l.b16 %v447
        %v529 = vunpack.c.h.b16 %v447
        %v530 = vunpack.c.l.b16 %v448
        %v531 = vunpack.c.h.b16 %v448
        %v532 = vunpack.c.l.b16 %v449
        %v533 = vunpack.c.h.b16 %v449
        %v534 = vunpack.c.l.b16 %v450
        %v535 = vunpack.c.h.b16 %v450
        %v536 = vunpack.c.l.b16 %v451
        %v537 = vunpack.c.h.b16 %v451
        %v538 = vunpack.c.l.b16 %v452
        %v539 = vunpack.c.h.b16 %v452
        %v540 = vunpack.c.l.b16 %v453
        %v541 = vunpack.c.h.b16 %v453
        %v542 = vunpack.c.l.b16 %v454
        %v543 = vunpack.c.h.b16 %v454
        %v544 = vunpack.c.l.b16 %v455
        %v545 = vunpack.c.h.b16 %v455
        %v546 = vunpack.c.l.b16 %v456
        %v547 = vunpack.c.h.b16 %v456
        %v548 = vunpack.c.l.b16 %v457
        %v549 = vunpack.c.h.b16 %v457
        %v550 = vunpack.c.l.b16 %v458
        %v551 = vunpack.c.h.b16 %v458
        %v552 = vunpack.c.l.b16 %v459
        %v553 = vunpack.c.h.b16 %v459
        %v554 = vunpack.c.l.b16 %v460
        %v555 = vunpack.c.h.b16 %v460
        %v556 = vunpack.c.l.b16 %v461
        %v557 = vunpack.c.h.b16 %v461
        %v558 = vunpack.c.l.b16 %v462
        %v559 = vunpack.c.h.b16 %v462
        %v560 = vunpack.c.l.b16 %v463
        %v561 = vunpack.c.h.b16 %v463
        %v562 = vunpack.c.l.b16 %v464
        %v563 = vunpack.c.h.b16 %v464
        %v564 = vunpack.c.l.b16 %v465
        %v565 = vunpack.c.h.b16 %v465
        %v566 = vunpack.c.l.b16 %v466
        %v567 = vunpack.c.h.b16 %v466
        %v568 = vunpack.c.l.b16 %v467
        %v569 = vunpack.c.h.b16 %v467
        %v570 = vunpack.c.l.b16 %v468
        %v571 = vunpack.c.h.b16 %v468
        %v572 = vunpack.c.l.b16 %v469
        %v573 = vunpack.c.h.b16 %v469
        %v574 = vunpack.c.l.b16 %v470
        %v575 = vunpack.c.h.b16 %v470
        %v576 = vunpack.c.l.b16 %v471
        %v577 = vunpack.c.h.b16 %v471
        %v578 = vunpack.c.l.b16 %v472
        %v579 = vunpack.c.h.b16 %v472
        %v580 = vunpack.c.l.b16 %v473
        %v581 = vunpack.c.h.b16 %v473
        %v582 = vpack.c.b16 %v520, %v518
        %v583 = vpack.c.b16 %v521, %v519
        %v584 = vpack.c.b16 %v524, %v522
        %v585 = vpack.c.b16 %v525, %v523
        %v586 = vpack.c.b16 %v528, %v526
        %v587 = vpack.c.b16 %v529, %v527
        %v588 = vpack.c.b16 %v532, %v530
        %v589 = vpack.c.b16 %v533, %v531
        %v590 = vpack.c.b16 %v536, %v534
        %v591 = vpack.c.b16 %v537, %v535
        %v592 = vpack.c.b16 %v540, %v538
        %v593 = vpack.c.b16 %v541, %v539
        %v594 = vpack.c.b16 %v544, %v542
        %v595 = vpack.c.b16 %v545, %v543
        %v596 = vpack.c.b16 %v548, %v546
        %v597 = vpack.c.b16 %v549, %v547
        %v598 = vpack.c.b16 %v552, %v550
        %v599 = vpack.c.b16 %v553, %v551
        %v600 = vpack.c.b16 %v556, %v554
        %v601 = vpack.c.b16 %v557, %v555
        %v602 = vpack.c.b16 %v560, %v558
        %v603 = vpack.c.b16 %v561, %v559
        %v604 = vpack.c.b16 %v564, %v562
        %v605 = vpack.c.b16 %v565, %v563
        %v606 = vpack.c.b16 %v568, %v566
        %v607 = vpack.c.b16 %v569, %v567
        %v608 = vpack.c.b16 %v572, %v570
        %v609 = vpack.c.b16 %v573, %v571
        %v610 = vpack.c.b16 %v576, %v574
        %v611 = vpack.c.b16 %v577, %v575
        %v612 = vpack.c.b16 %v580, %v578
        %v613 = vpack.c.b16 %v581, %v579
        %646 = vmatprep.subr.bf16.mxu0 %v583
        %647 = vmatpush1.bf16.msra.mxu0 %v582
        %648 = vmatprep.subr.bf16.mxu0 %v585
        %649 = vmatpush1.bf16.msra.mxu0 %v584
        %650 = vmatprep.subr.bf16.mxu0 %v587
        %651 = vmatpush1.bf16.msra.mxu0 %v586
        %652 = vmatprep.subr.bf16.mxu0 %v589
        %653 = vmatpush1.bf16.msra.mxu0 %v588
        %654 = vmatprep.subr.bf16.mxu0 %v591
        %655 = vmatpush1.bf16.msra.mxu0 %v590
        %656 = vmatprep.subr.bf16.mxu0 %v593
        %657 = vmatpush1.bf16.msra.mxu0 %v592
        %658 = vmatprep.subr.bf16.mxu0 %v595
        %659 = vmatpush1.bf16.msra.mxu0 %v594
        %660 = vmatprep.subr.bf16.mxu0 %v597
        %661 = vmatpush1.bf16.msra.mxu0 %v596
        %662 = vmatprep.subr.bf16.mxu0 %v599
        %663 = vmatpush1.bf16.msra.mxu0 %v598
        %664 = vmatprep.subr.bf16.mxu0 %v601
        %665 = vmatpush1.bf16.msra.mxu0 %v600
        %666 = vmatprep.subr.bf16.mxu0 %v603
        %667 = vmatpush1.bf16.msra.mxu0 %v602
        %668 = vmatprep.subr.bf16.mxu0 %v605
        %669 = vmatpush1.bf16.msra.mxu0 %v604
        %670 = vmatprep.subr.bf16.mxu0 %v607
        %671 = vmatpush1.bf16.msra.mxu0 %v606
        %672 = vmatprep.subr.bf16.mxu0 %v609
        %673 = vmatpush1.bf16.msra.mxu0 %v608
        %674 = vmatprep.subr.bf16.mxu0 %v611
        %675 = vmatpush1.bf16.msra.mxu0 %v610
        %676 = vmatprep.subr.bf16.mxu0 %v613
        %677 = vmatpush1.bf16.msra.mxu0 %v612
        %678 = vmatprep.mubr.bf16.mxu0 %v441
        %679 = vmatmul.mubr.bf16.gmra.mrb[0].mxu0 %v440
        %v680 = vpop.f32.mrb[0].mxu0
        %v681 = vadd.f32 %v479, %v680
        %v682 = vpop.f32.mrb[0].mxu0
        %v683 = vadd.f32 %v483, %v682
        %v684 = vpop.f32.mrb[0].mxu0
        %v685 = vadd.f32 %v479, %v684
        %v686 = vpop.f32.mrb[0].mxu0
        %v687 = vadd.f32 %v483, %v686
        %688 = vdwg.mxu0
        %v689 = vmax.f32 %v681, 0.0
        %v690 = vmax.f32 %v683, 0.0
        %v691 = vmax.f32 %v685, 0.0
        %v692 = vmax.f32 %v687, 0.0
        %v693 = vpack.c.bf16 %v691, %v689
        %v694 = vpack.c.bf16 %v692, %v690
        %v695 = vld [vmem:[%s5] sm:$0xf]
        %v696 = vld [vmem:[%s5 + $0x4] sm:$0xf]
        %v697 = vld [vmem:[%s5 + $0x8] sm:$0xf]
        %v698 = vld [vmem:[%s5 + $0xc] sm:$0xf]
        %v699 = vld [vmem:[%s5 + $0x10] sm:$0xf]
        %v700 = vld [vmem:[%s5 + $0x14] sm:$0xf]
        %v701 = vld [vmem:[%s5 + $0x18] sm:$0xf]
        %v702 = vld [vmem:[%s5 + $0x1c] sm:$0xf]
        %v703 = vld [vmem:[%s5 + $0x20] sm:$0xf]
        %v704 = vld [vmem:[%s5 + $0x24] sm:$0xf]
        %v705 = vld [vmem:[%s5 + $0x28] sm:$0xf]
        %v706 = vld [vmem:[%s5 + $0x2c] sm:$0xf]
        %v707 = vld [vmem:[%s5 + $0x30] sm:$0xf]
        %v708 = vld [vmem:[%s5 + $0x34] sm:$0xf]
        %v709 = vld [vmem:[%s5 + $0x38] sm:$0xf]
        %v710 = vld [vmem:[%s5 + $0x3c] sm:$0xf]
        %v711 = vld [vmem:[%s5 + $0x40] sm:$0xf]
        %v712 = vld [vmem:[%s5 + $0x44] sm:$0xf]
        %v713 = vld [vmem:[%s5 + $0x48] sm:$0xf]
        %v714 = vld [vmem:[%s5 + $0x4c] sm:$0xf]
        %v715 = vld [vmem:[%s5 + $0x50] sm:$0xf]
        %v716 = vld [vmem:[%s5 + $0x54] sm:$0xf]
        %v717 = vld [vmem:[%s5 + $0x58] sm:$0xf]
        %v718 = vld [vmem:[%s5 + $0x5c] sm:$0xf]
        %v719 = vld [vmem:[%s5 + $0x60] sm:$0xf]
        %v720 = vld [vmem:[%s5 + $0x64] sm:$0xf]
        %v721 = vld [vmem:[%s5 + $0x68] sm:$0xf]
        %v722 = vld [vmem:[%s5 + $0x6c] sm:$0xf]
        %v723 = vld [vmem:[%s5 + $0x70] sm:$0xf]
        %v724 = vld [vmem:[%s5 + $0x74] sm:$0xf]
        %v725 = vld [vmem:[%s5 + $0x78] sm:$0xf]
        %v726 = vld [vmem:[%s5 + $0x7c] sm:$0xf]
        %v727 = vld [vmem:[%s6] sm:$0x1]
        %v729 = vlaneseq
        %v730 = vshrl.u32 %v729, 7
        %v731 = vsub.s32 0, %v730
        %v732 = vrot.slane %v727, %v731
        %v766 = vunpack.c.l.b16 %v695
        %v767 = vunpack.c.l.b16 %v696
        %v768 = vunpack.c.l.b16 %v697
        %v769 = vunpack.c.l.b16 %v698
        %v770 = vunpack.c.l.b16 %v699
        %v771 = vunpack.c.l.b16 %v700
        %v772 = vunpack.c.l.b16 %v701
        %v773 = vunpack.c.l.b16 %v702
        %v774 = vunpack.c.l.b16 %v703
        %v775 = vunpack.c.l.b16 %v704
        %v776 = vunpack.c.l.b16 %v705
        %v777 = vunpack.c.l.b16 %v706
        %v778 = vunpack.c.l.b16 %v707
        %v779 = vunpack.c.l.b16 %v708
        %v780 = vunpack.c.l.b16 %v709
        %v781 = vunpack.c.l.b16 %v710
        %v782 = vunpack.c.l.b16 %v711
        %v783 = vunpack.c.l.b16 %v712
        %v784 = vunpack.c.l.b16 %v713
        %v785 = vunpack.c.l.b16 %v714
        %v786 = vunpack.c.l.b16 %v715
        %v787 = vunpack.c.l.b16 %v716
        %v788 = vunpack.c.l.b16 %v717
        %v789 = vunpack.c.l.b16 %v718
        %v790 = vunpack.c.l.b16 %v719
        %v791 = vunpack.c.l.b16 %v720
        %v792 = vunpack.c.l.b16 %v721
        %v793 = vunpack.c.l.b16 %v722
        %v794 = vunpack.c.l.b16 %v723
        %v795 = vunpack.c.l.b16 %v724
        %v796 = vunpack.c.l.b16 %v725
        %v797 = vunpack.c.l.b16 %v726
        %v798 = vpack.c.b16 %v767, %v766
        %v799 = vpack.c.b16 %v769, %v768
        %v800 = vpack.c.b16 %v771, %v770
        %v801 = vpack.c.b16 %v773, %v772
        %v802 = vpack.c.b16 %v775, %v774
        %v803 = vpack.c.b16 %v777, %v776
        %v804 = vpack.c.b16 %v779, %v778
        %v805 = vpack.c.b16 %v781, %v780
        %v806 = vpack.c.b16 %v783, %v782
        %v807 = vpack.c.b16 %v785, %v784
        %v808 = vpack.c.b16 %v787, %v786
        %v809 = vpack.c.b16 %v789, %v788
        %v810 = vpack.c.b16 %v791, %v790
        %v811 = vpack.c.b16 %v793, %v792
        %v812 = vpack.c.b16 %v795, %v794
        %v813 = vpack.c.b16 %v797, %v796
        %830 = vmatprep.subr.bf16.mxu0 0
        %831 = vmatpush1.bf16.msra.mxu0 %v798
        %832 = vmatprep.subr.bf16.mxu0 0
        %833 = vmatpush1.bf16.msra.mxu0 %v799
        %834 = vmatprep.subr.bf16.mxu0 0
        %835 = vmatpush1.bf16.msra.mxu0 %v800
        %836 = vmatprep.subr.bf16.mxu0 0
        %837 = vmatpush1.bf16.msra.mxu0 %v801
        %838 = vmatprep.subr.bf16.mxu0 0
        %839 = vmatpush1.bf16.msra.mxu0 %v802
        %840 = vmatprep.subr.bf16.mxu0 0
        %841 = vmatpush1.bf16.msra.mxu0 %v803
        %842 = vmatprep.subr.bf16.mxu0 0
        %843 = vmatpush1.bf16.msra.mxu0 %v804
        %844 = vmatprep.subr.bf16.mxu0 0
        %845 = vmatpush1.bf16.msra.mxu0 %v805
        %846 = vmatprep.subr.bf16.mxu0 0
        %847 = vmatpush1.bf16.msra.mxu0 %v806
        %848 = vmatprep.subr.bf16.mxu0 0
        %849 = vmatpush1.bf16.msra.mxu0 %v807
        %850 = vmatprep.subr.bf16.mxu0 0
        %851 = vmatpush1.bf16.msra.mxu0 %v808
        %852 = vmatprep.subr.bf16.mxu0 0
        %853 = vmatpush1.bf16.msra.mxu0 %v809
        %854 = vmatprep.subr.bf16.mxu0 0
        %855 = vmatpush1.bf16.msra.mxu0 %v810
        %856 = vmatprep.subr.bf16.mxu0 0
        %857 = vmatpush1.bf16.msra.mxu0 %v811
        %858 = vmatprep.subr.bf16.mxu0 0
        %859 = vmatpush1.bf16.msra.mxu0 %v812
        %860 = vmatprep.subr.bf16.mxu0 0
        %861 = vmatpush1.bf16.msra.mxu0 %v813
        %862 = vmatprep.mubr.bf16.mxu0 %v694
        %863 = vmatmul.mubr.bf16.gmra.mrb[0].mxu0 %v693
        %v864 = vpop.f32.mrb[0].mxu0
        %v865 = vadd.f32 %v732, %v864
        %v866 = vpop.f32.mrb[0].mxu0
        %v867 = vpop.f32.mrb[0].mxu0
        %v868 = vadd.f32 %v732, %v867
        %v869 = vpop.f32.mrb[0].mxu0
        %870 = vdwg.mxu0
        %v871 = vmul.f32 %v865, 0.5
        %v872 = vmul.f32 %v868, 0.5
        %v873 = vtanh.pop %v871
        %v874 = vtanh.pop %v872
        %v875 = vmul.f32 %v873, 2.0
        %v876 = vmul.f32 %v874, 2.0
        %vm877 = vcmask 39936
        %878 = vst.msk [vmem:[%s295] sm:$0xff] %vm877, %v875
        %879 = vst.msk [vmem:[%s295 + $0x8] sm:$0xff] %vm877, %v876
        %s880 = sand.u32 %s179, 1
        %s881 = sand.u32 %s179, 1
        %s882 = smul.addr %s881, 16
        %s883 = scalar_lea.vmem [#allocation4], %s882
        // Predicated region
        $region53: #{pareto_set_model_forward.1} parent=47 // pred_check
          %p884 = pneg %p189
        $region54: #{pareto_set_model_forward.1} parent=47 // pred_check_branch
          %886 = sbr.rel (%p884) target = $region56
        $region55: #{pareto_set_model_forward.1} parent=47 // pred_region
          %s887 = smul.u32 2, %s19
          %s888 = ssub.s32 3, %s887
          %p889 = scmp.lt.s32.totalorder %s888, 2
          %s890 = scalar_select %p889, %s888, 2
          %s891 = smul.u32 128, %s890
          %p892 = scmp.ne.s32.totalorder 0, %s891
          %s893 = smul.addr %s887, 8
          %s894 = scalar_lea.vmem %s7, %s893
          // Predicated region
          $region57: #{pareto_set_model_forward.1} parent=55 // pred_check
            %p895 = pneg %p892
          $region58: #{pareto_set_model_forward.1} parent=55 // pred_check_branch
            %897 = sbr.rel (%p895) target = $region60
          $region59: #{pareto_set_model_forward.1} parent=55 // pred_region
            // Predicated region
            $region61: #{pareto_set_model_forward.1} parent=59 // pred_check
              _
            $region62: #{pareto_set_model_forward.1} parent=59 // pred_check_branch
              %899 = sbr.rel (0) target = $region64
            $region63: #{pareto_set_model_forward.1} parent=59 // pred_region
              // Predicated region
              $region83: #{pareto_set_model_forward.1} parent=63 // pred_check
                _
              $region84: #{pareto_set_model_forward.1} parent=63 // pred_check_branch
                %950 = sbr.rel (0) target = $region86
              $region85: #{pareto_set_model_forward.1} parent=63 // pred_region
                %s951 = sshrl.u32 %s890, 1
                // While loop
                $region87: #{pareto_set_model_forward.1} parent=85 // loop_pre_header
                  _
                $region88: #{pareto_set_model_forward.1} parent=85 // loop_header
                  %s953 = sphi 0, %s955
                  %p954 = scmp.ge.s32.totalorder %s953, %s951
                  %s958 = sphi 0, %s967
                  %s959 = sphi %s883, %s970
                  %s960 = sphi %s894, %s971
                $region89: #{pareto_set_model_forward.1} parent=85 // loop_header_branch
                  %957 = sbr.rel (%p954) target = $region93
                $region90: #{pareto_set_model_forward.1} parent=85 // loop_body
                  %v961 = vld [vmem:[%s959] sm:$0xff]
                  %962 = vst [vmem:[%s960] sm:$0xff] %v961
                  %v963 = vld [vmem:[%s959 + $0x8] sm:$0xff]
                  %964 = vst [vmem:[%s960 + $0x8] sm:$0xff] %v963
                  %s965 = sadd.s32 1, %s958
                  %p966 = scmp.ge.s32.totalorder %s965, %s951
                  %s967 = scalar_select %p966, 0, %s965
                  %s968 = smul.u32 %s967, 16
                  %s969 = smul.u32 %s967, 16
                  %s970 = scalar_lea.vmem %s883, %s968 [#allocation4]
                  %s971 = scalar_lea.vmem %s894, %s969
                $region91: #{pareto_set_model_forward.1} parent=85 // loop_footer
                  %s955 = sadd.s32 %s953, 1
                $region92: #{pareto_set_model_forward.1} parent=85 // loop_footer_branch
                  %952 = sbr.rel target = $region88
                $region93: #{pareto_set_model_forward.1} parent=85 // loop_exit
                  _
                %s972 = sshrl.u32 %s890, 1
                %s973 = sand.u32 %s890, 1
                %s974 = smul.u32 %s972, 2
                %s975 = smul.u32 8, %s974
                %s976 = scalar_lea.vmem %s883, %s975 [#allocation4]
                %s977 = smul.u32 8, %s974
                %s978 = scalar_lea.vmem %s894, %s977
                // While loop
                $region94: #{pareto_set_model_forward.1} parent=85 // loop_pre_header
                  _
                $region95: #{pareto_set_model_forward.1} parent=85 // loop_header
                  %s980 = sphi 0, %s982
                  %p981 = scmp.ge.s32.totalorder %s980, %s973
                  %s985 = sphi 0, %s992
                  %s986 = sphi %s976, %s995
                  %s987 = sphi %s978, %s996
                $region96: #{pareto_set_model_forward.1} parent=85 // loop_header_branch
                  %984 = sbr.rel (%p981) target = $region100
                $region97: #{pareto_set_model_forward.1} parent=85 // loop_body
                  %v988 = vld [vmem:[%s986] sm:$0xff]
                  %989 = vst [vmem:[%s987] sm:$0xff] %v988
                  %s990 = sadd.s32 1, %s985
                  %p991 = scmp.ge.s32.totalorder %s990, %s973
                  %s992 = scalar_select %p991, 0, %s990
                  %s993 = smul.u32 %s992, 8
                  %s994 = smul.u32 %s992, 8
                  %s995 = scalar_lea.vmem %s976, %s993 [#allocation4]
                  %s996 = scalar_lea.vmem %s978, %s994
                $region98: #{pareto_set_model_forward.1} parent=85 // loop_footer
                  %s982 = sadd.s32 %s980, 1
                $region99: #{pareto_set_model_forward.1} parent=85 // loop_footer_branch
                  %979 = sbr.rel target = $region95
                $region100: #{pareto_set_model_forward.1} parent=85 // loop_exit
                  _
              $region86: #{pareto_set_model_forward.1} parent=63 // pred_fallthru
                _
              // Predicated region
              $region101: #{pareto_set_model_forward.1} parent=63 // pred_check
                _
              $region102: #{pareto_set_model_forward.1} parent=63 // pred_check_branch
                %998 = sbr.rel target = $region104
              $region103: #{pareto_set_model_forward.1} parent=63 // pred_region
                _
              $region104: #{pareto_set_model_forward.1} parent=63 // pred_fallthru
                _
            $region64: #{pareto_set_model_forward.1} parent=59 // pred_fallthru
              _
            // Predicated region
            $region65: #{pareto_set_model_forward.1} parent=59 // pred_check
              _
            $region66: #{pareto_set_model_forward.1} parent=59 // pred_check_branch
              %901 = sbr.rel target = $region68
            $region67: #{pareto_set_model_forward.1} parent=59 // pred_region
              %s903 = sshrl.u32 %s890, 1
              // While loop
              $region69: #{pareto_set_model_forward.1} parent=67 // loop_pre_header
                _
              $region70: #{pareto_set_model_forward.1} parent=67 // loop_header
                %s905 = sphi 0, %s907
                %p906 = scmp.ge.s32.totalorder %s905, %s903
                %s910 = sphi 0, %s919
                %s911 = sphi %s883, %s922
                %s912 = sphi %s894, %s923
              $region71: #{pareto_set_model_forward.1} parent=67 // loop_header_branch
                %909 = sbr.rel (%p906) target = $region75
              $region72: #{pareto_set_model_forward.1} parent=67 // loop_body
                %v913 = vld [vmem:[%s911] sm:$0xff]
                %914 = vst [vmem:[%s912] sm:$0xff] %v913
                %v915 = vld [vmem:[%s911 + $0x8] sm:$0xff]
                %916 = vst [vmem:[%s912 + $0x8] sm:$0xff] %v915
                %s917 = sadd.s32 1, %s910
                %p918 = scmp.ge.s32.totalorder %s917, %s903
                %s919 = scalar_select %p918, 0, %s917
                %s920 = smul.u32 %s919, 16
                %s921 = smul.u32 %s919, 16
                %s922 = scalar_lea.vmem %s883, %s920 [#allocation4]
                %s923 = scalar_lea.vmem %s894, %s921
              $region73: #{pareto_set_model_forward.1} parent=67 // loop_footer
                %s907 = sadd.s32 %s905, 1
              $region74: #{pareto_set_model_forward.1} parent=67 // loop_footer_branch
                %904 = sbr.rel target = $region70
              $region75: #{pareto_set_model_forward.1} parent=67 // loop_exit
                _
              %s924 = sshrl.u32 %s890, 1
              %s925 = sand.u32 %s890, 1
              %s926 = smul.u32 %s924, 2
              %s927 = smul.u32 8, %s926
              %s928 = scalar_lea.vmem %s883, %s927 [#allocation4]
              %s929 = smul.u32 8, %s926
              %s930 = scalar_lea.vmem %s894, %s929
              // While loop
              $region76: #{pareto_set_model_forward.1} parent=67 // loop_pre_header
                _
              $region77: #{pareto_set_model_forward.1} parent=67 // loop_header
                %s932 = sphi 0, %s934
                %p933 = scmp.ge.s32.totalorder %s932, %s925
                %s937 = sphi 0, %s944
                %s938 = sphi %s928, %s947
                %s939 = sphi %s930, %s948
              $region78: #{pareto_set_model_forward.1} parent=67 // loop_header_branch
                %936 = sbr.rel (%p933) target = $region82
              $region79: #{pareto_set_model_forward.1} parent=67 // loop_body
                %v940 = vld [vmem:[%s938] sm:$0xff]
                %941 = vst [vmem:[%s939] sm:$0xff] %v940
                %s942 = sadd.s32 1, %s937
                %p943 = scmp.ge.s32.totalorder %s942, %s925
                %s944 = scalar_select %p943, 0, %s942
                %s945 = smul.u32 %s944, 8
                %s946 = smul.u32 %s944, 8
                %s947 = scalar_lea.vmem %s928, %s945 [#allocation4]
                %s948 = scalar_lea.vmem %s930, %s946
              $region80: #{pareto_set_model_forward.1} parent=67 // loop_footer
                %s934 = sadd.s32 %s932, 1
              $region81: #{pareto_set_model_forward.1} parent=67 // loop_footer_branch
                %931 = sbr.rel target = $region77
              $region82: #{pareto_set_model_forward.1} parent=67 // loop_exit
                _
            $region68: #{pareto_set_model_forward.1} parent=59 // pred_fallthru
              _
          $region60: #{pareto_set_model_forward.1} parent=55 // pred_fallthru
            _
          %999 = vnop
        $region56: #{pareto_set_model_forward.1} parent=47 // pred_fallthru
          _
      $region48: #{pareto_set_model_forward.1} parent=5 // pred_fallthru
        _
      %p1000 = scmp.le.s32.totalorder 2, %s14
      // Predicated region
      $region105: #{pareto_set_model_forward.1} parent=5 // pred_check
        %p1001 = pneg %p1000
      $region106: #{pareto_set_model_forward.1} parent=5 // pred_check_branch
        %1003 = sbr.rel (%p1001) target = $region108
      $region107: #{pareto_set_model_forward.1} parent=5 // pred_region
        %s1004 = ssub.s32 %s14, 2
        // Predicated region
        $region109: #{pareto_set_model_forward.1} parent=107 // pred_check
          %p1005 = pneg %p195
        $region110: #{pareto_set_model_forward.1} parent=107 // pred_check_branch
          %1007 = sbr.rel (%p1005) target = $region112
        $region111: #{pareto_set_model_forward.1} parent=107 // pred_region
          %s1008 = sand.u32 %s180, 1
          %s1009 = sand.u32 %s180, 1
          %s1010 = smul.addr %s1009, 16
          %s1011 = scalar_lea.vmem [#allocation4], %s1010
        $region112: #{pareto_set_model_forward.1} parent=107 // pred_fallthru
          _
      $region108: #{pareto_set_model_forward.1} parent=5 // pred_fallthru
        _
    $region6: #{pareto_set_model_forward.1} parent=1 // loop_footer
      %s18 = sadd.s32 1, %s14
    $region7: #{pareto_set_model_forward.1} parent=1 // loop_footer_branch
      %13 = sbr.rel target = $region3
    $region8: #{pareto_set_model_forward.1} parent=1 // loop_exit
      _
    %1012 = vsyncpa [#allocation3], 1
    %s1013 = scalar_lea.sflag [#allocation3], 1
    %1014 = vsyncpa %s1013, 1

</llo_original>
